<compile_context>
chip_gen: v6e
topology: v6e:2x2x1
jax: 0.10.0
libtpu: 0.0.40
codegen_flags: <defaults>
</compile_context>

<pallas_src>
import math
import functools

import jax
import jax.numpy as jnp
from jax import lax
from jax.experimental import pallas as pl
from jax.experimental.pallas import tpu as pltpu


# ----------------------------------------------------------------------------
# Parameter ("pe" buffer) construction — deterministic, matches nn.Module init.
# ----------------------------------------------------------------------------
def make_pe_table(d_model: int, max_len: int) -> jnp.ndarray:
    """pe table of shape [max_len, d_model] (the PyTorch buffer squeezed on dim 1)."""
    position = jnp.arange(max_len, dtype=jnp.float32)[:, None]          # [max_len, 1]
    div_term = jnp.exp(
        jnp.arange(0, d_model, 2, dtype=jnp.float32)
        * (-math.log(10000.0) / d_model)
    )                                                                   # [d_model//2]
    pe = jnp.zeros((max_len, d_model), dtype=jnp.float32)
    pe = pe.at[:, 0::2].set(jnp.sin(position * div_term))
    pe = pe.at[:, 1::2].set(jnp.cos(position * div_term))
    return pe


# ----------------------------------------------------------------------------
# In-kernel counter-based PRNG helpers (pure jnp int32 ops: portable to
# Mosaic-TPU and interpret mode alike).
# ----------------------------------------------------------------------------
def _lsr(h, n):
    """Logical right shift on int32 (arithmetic shift + mask of high bits)."""
    return (h >> n) & jnp.int32((1 << (32 - n)) - 1)


def _fmix32(h):
    """murmur3 finalizer: mixes an int32 counter into well-distributed bits."""
    h = h ^ _lsr(h, 16)
    h = h * jnp.int32(-2048144789)   # 0x85EBCA6B
    h = h ^ _lsr(h, 13)
    h = h * jnp.int32(-1028477387)   # 0xC2B2AE35
    h = h ^ _lsr(h, 16)
    return h


# ----------------------------------------------------------------------------
# Pallas kernel: fused (x + pe) add and dropout on a lane-dense (TS, B*D) tile.
# ----------------------------------------------------------------------------
def _pe_dropout_kernel(seed_ref, x_ref, pe_ref, o_ref, *, dropout_p, train, tile_rows):
    # x_ref : (TS, BD) VMEM   pe_ref : (1, BD) VMEM (resident)   o_ref : (TS, BD)
    x = x_ref[...]
    pe = pe_ref[...]
    y = x + pe                                   # broadcast over seq rows

    if train and dropout_p > 0.0:
        bd = y.shape[1]
        # Global element index -> independent bits per element, per tile.
        row = lax.broadcasted_iota(jnp.int32, y.shape, 0)
        col = lax.broadcasted_iota(jnp.int32, y.shape, 1)
        gidx = (row + pl.program_id(0) * jnp.int32(tile_rows)) * jnp.int32(bd) + col
        h = gidx * jnp.int32(-1640531527) + seed_ref[0]      # 0x9E3779B9 * idx + seed
        h = _fmix32(h)
        r = h & jnp.int32(0x7FFFFFFF)                        # uniform in [0, 2^31)
        thresh = jnp.int32(int(dropout_p * float(1 << 31)))  # keep with prob 1-p
        keep = r >= thresh
        scale = jnp.float32(1.0 / (1.0 - dropout_p))
        # exactly one select + one multiply per element
        y = jnp.where(keep, y, 0.0) * scale

    o_ref[...] = y.astype(o_ref.dtype)


# ----------------------------------------------------------------------------
# Wrapper
# ----------------------------------------------------------------------------
def positional_encoding_forward(x, pe_table, *, dropout_p=0.1, train=False, seed=0):
    """x: [seq_len, batch, d_model].  Returns same shape/dtype."""
    S, B, D = x.shape
    BD = B * D
    itemsize = x.dtype.itemsize

    # Lane-dense view: (S, B*D); pe broadcast over the seq axis.
    x2 = x.reshape(S, BD)
    pe2 = pe_table[:B, :].astype(x.dtype).reshape(1, BD)     # matches pe[:x.size(0)] post-permute
    seed_arr = jnp.array([seed], dtype=jnp.int32)

    # Tile the seq axis.  Budget ~24 MiB for (x tile + out tile) x double
    # buffering so the kernel also fits v7x's 64 MiB physical / 32 MiB scoped
    # VMEM with full pipelining.
    vmem_budget = 24 << 20
    max_rows = max(8, vmem_budget // (4 * BD * itemsize))
    if S <= max_rows:
        tile_rows = S                       # full extent — always legal
    else:
        tile_rows = max(8, (max_rows // 8) * 8)
    grid = (pl.cdiv(S, tile_rows),)

    kernel = functools.partial(
        _pe_dropout_kernel,
        dropout_p=float(dropout_p),
        train=bool(train),
        tile_rows=tile_rows,
    )

    # Mem-bound elementwise op: 1 read + 1 write of x (+ tiny pe read).
    cost = pl.CostEstimate(
        flops=S * BD,
        transcendentals=0,
        bytes_accessed=2 * S * BD * itemsize + BD * itemsize,
    )

    out2 = pl.pallas_call(
        kernel,
        out_shape=jax.ShapeDtypeStruct((S, BD), x.dtype),
        grid=grid,
        in_specs=[
            pl.BlockSpec(memory_space=pltpu.MemorySpace.SMEM),       # seed scalar
            pl.BlockSpec((tile_rows, BD), lambda i: (i, 0)),         # x tile
            pl.BlockSpec((1, BD), lambda i: (0, 0)),                 # pe (resident)
        ],
        out_specs=pl.BlockSpec((tile_rows, BD), lambda i: (i, 0)),
        compiler_params=pltpu.CompilerParams(
            dimension_semantics=("parallel",),                        # 2 TCs on v7x
        ),
        cost_estimate=cost,
    )(seed_arr, x2, pe2)

    return out2.reshape(S, B, D)


# ----------------------------------------------------------------------------
# Main
# ----------------------------------------------------------------------------
if __name__ == "__main__":
    seq_len, batch, d_model = 8, 2, 32
    max_len = 64

    key = jax.random.PRNGKey(0)
    x = jax.random.normal(key, (seq_len, batch, d_model), dtype=jnp.float32)

    pe_table = make_pe_table(d_model, max_len)

    # Eval mode (deterministic) — check against a pure-JAX reference.
    out_eval = positional_encoding_forward(x, pe_table, dropout_p=0.1, train=False)
    out_eval = jax.block_until_ready(out_eval)
    ref = x + pe_table[:batch][None, :, :]      # out[s,b,:] = x[s,b,:] + pe[b,:]
    assert jnp.allclose(out_eval, ref, atol=1e-6), "eval-mode mismatch"

    # Train mode (dropout active, in-kernel counter-based PRNG, fixed seed).
    out_train = positional_encoding_forward(
        x, pe_table, dropout_p=0.1, train=True, seed=0
    )
    out_train = jax.block_until_ready(out_train)
    assert out_train.shape == (seq_len, batch, d_model)
    # Sanity: every output element is either exactly 0 (dropped) or the
    # eval-mode value scaled by 1/(1-p) (kept).
    scaled = ref / (1.0 - 0.1)
    ok = jnp.logical_or(jnp.isclose(out_train, 0.0, atol=1e-7),
                        jnp.isclose(out_train, scaled, atol=1e-5))
    assert bool(jnp.all(ok)), "train-mode dropout values inconsistent"

    print("KERNEL_OK")
</pallas_src>

<mosaic_0001>
module attributes {stable_mosaic.version = 11 : i64} {
  func.func @_pe_dropout_kernel(%arg0: i32, %arg1: memref<1xi32, #tpu.memory_space<smem>>, %arg2: memref<8x64xf32, #tpu.memory_space<vmem>>, %arg3: memref<1x64xf32, #tpu.memory_space<vmem>>, %arg4: memref<8x64xf32, #tpu.memory_space<vmem>>) attributes {dimension_semantics = [#tpu.dimension_semantics<parallel>], iteration_bounds = array<i64: 1>, scalar_prefetch = 0 : i64, scratch_operands = 0 : i64, tpu.core_type = #tpu.core_type<tc>, window_params = [{transform_indices = @transform_0, window_bounds = array<i64: 1>}, {transform_indices = @transform_1, window_bounds = array<i64: 8, 64>}, {pipeline_mode = #tpu.pipeline_mode<synchronous>, transform_indices = @transform_2, window_bounds = array<i64: 1, 64>}, {transform_indices = @transform_3, window_bounds = array<i64: 8, 64>}]} {
    %c0 = arith.constant 0 : index
    %c0_0 = arith.constant 0 : index
    %0 = vector.load %arg2[%c0, %c0_0] : memref<8x64xf32, #tpu.memory_space<vmem>>, vector<8x64xf32>
    %c0_1 = arith.constant 0 : index
    %c0_2 = arith.constant 0 : index
    %1 = vector.load %arg3[%c0_1, %c0_2] : memref<1x64xf32, #tpu.memory_space<vmem>>, vector<1x64xf32>
    %2 = vector.broadcast %1 : vector<1x64xf32> to vector<8x64xf32>
    %3 = arith.addf %0, %2 : vector<8x64xf32>
    %c0_3 = arith.constant 0 : index
    %c0_4 = arith.constant 0 : index
    %4 = vector.load %arg4[%c0_3, %c0_4] : memref<8x64xf32, #tpu.memory_space<vmem>>, vector<8x64xf32>
    tpu.vector_store %arg4[%c0_3, %c0_4], %3 {strides = array<i32>} : memref<8x64xf32, #tpu.memory_space<vmem>>, vector<8x64xf32>,
    return
  }
  func.func @transform_0(%arg0: i32) -> i32 {
    %c0_i32 = arith.constant 0 : i32
    %c0_i32_0 = arith.constant 0 : i32
    return %c0_i32 : i32
  }
  func.func @transform_1(%arg0: i32) -> (i32, i32) {
    %c0_i32 = arith.constant 0 : i32
    %c0_i32_0 = arith.constant 0 : i32
    return %arg0, %c0_i32 : i32, i32
  }
  func.func @transform_2(%arg0: i32) -> (i32, i32) {
    %c0_i32 = arith.constant 0 : i32
    %c0_i32_0 = arith.constant 0 : i32
    %c0_i32_1 = arith.constant 0 : i32
    return %c0_i32, %c0_i32_0 : i32, i32
  }
  func.func @transform_3(%arg0: i32) -> (i32, i32) {
    %c0_i32 = arith.constant 0 : i32
    %c0_i32_0 = arith.constant 0 : i32
    return %arg0, %c0_i32 : i32, i32
  }
}

</mosaic_0001>

<llo_original>
// kernel: tpu_custom_call.1
$region0: #{tpu_custom_call.1}
  #allocation0 [shape = 'u32[]', space=smem, size = 0x4, offset = 0x4, fixed_abs, tag = 'smem constant byte address 0x4 - core index']
  #allocation1 [shape = 'u32[144,128]{1,0:T(1,128)}', space=vmem, size = 0x12000, scoped, tag = 'internal scratch']
  #allocation2 [shape = 's32[1]{0:T(128)S(6)}', space=smem, size = 0x200, scoped, tag = 'scoped memory for tpu_custom_call.1']
  %s0 = inlined_call_operand.<no memory space> [shape: s32[1], index: 0, kind: input, shape index: {}]
  %s1 = inlined_call_operand.hbm [shape: f32[8,64], index: 1, kind: input, shape index: {}]
  %s2 = inlined_call_operand.vmem [shape: f32[1,64], index: 2, kind: input, shape index: {}]
  %s3 = inlined_call_operand.hbm [shape: f32[8,64], index: 3, kind: output, shape index: {}]
  %s4 = sld [smem:[#allocation0]]
  $region26: #{tpu_custom_call.1} parent=0
    _
  %s6 = ssub.s32 1, %s4
  %s7 = scalar_select 0, %s6, %s4
  %8 = sst [smem:[#allocation2]] %s0
  $region1: #{tpu_custom_call.1} parent=0
    #allocation3 [shape = 'u8[4096]{0}', space=vmem, size = 0x1000, scoped, tag = 'input window, operand 1, single buffered']
    #allocation4 [shape = 's32[1]{0}', space=sflag, size = 0x4, scoped, tag = 'scoped memory for tpu_custom_call.1']
    #allocation5 [shape = 's32[1]{0}', space=sflag, size = 0x4, scoped, tag = 'scoped memory for tpu_custom_call.1']
    #allocation6 [shape = 'u8[4096]{0}', space=vmem, size = 0x1000, scoped, tag = 'output window, operand 0, single buffered']
    %9 = vsyncpa [#allocation4], 0
    %10 = vsyncpa [#allocation5], 0
    // Predicated region
    $region2: #{tpu_custom_call.1} parent=1 // pred_check
      _
    $region3: #{tpu_custom_call.1} parent=1 // pred_check_branch
      %12 = sbr.rel (0) target = $region5
    $region4: #{tpu_custom_call.1} parent=1 // pred_region
      _
    $region5: #{tpu_custom_call.1} parent=1 // pred_fallthru
      _
    // Predicated region
    $region6: #{tpu_custom_call.1} parent=1 // pred_check
      _
    $region7: #{tpu_custom_call.1} parent=1 // pred_check_branch
      %14 = sbr.rel (0) target = $region9
    $region8: #{tpu_custom_call.1} parent=1 // pred_region
      %s16 = ssub.s32 128, 128
      %17 = vsyncadd [#allocation4], %s16
      %s19 = sshll.u32 [#allocation3], 4
      %s20 = int_to_ptr.vmem [resolvable:$true] %s19
      %22 = dma.hbm_to_vmem [thread:$0]  %s1, 128, %s20, [#allocation4]
    $region9: #{tpu_custom_call.1} parent=1 // pred_fallthru
      _
    // Predicated region
    $region10: #{tpu_custom_call.1} parent=1 // pred_check
      _
    $region11: #{tpu_custom_call.1} parent=1 // pred_check_branch
      %24 = sbr.rel (0) target = $region13
    $region12: #{tpu_custom_call.1} parent=1 // pred_region
      _
    $region13: #{tpu_custom_call.1} parent=1 // pred_fallthru
      _
    // Predicated region
    $region14: #{tpu_custom_call.1} parent=1 // pred_check
      _
    $region15: #{tpu_custom_call.1} parent=1 // pred_check_branch
      %26 = sbr.rel (0) target = $region17
    $region16: #{tpu_custom_call.1} parent=1 // pred_region
      %27 = dma.done [#allocation4], 128
    $region17: #{tpu_custom_call.1} parent=1 // pred_fallthru
      _
    %v28 = vld [vmem:[#allocation3] sm:$0xff]
    %v29 = vld [vmem:[%s2] sm:$0x1]
    %v31 = vlaneseq
    %v32 = vshrl.u32 %v31, 7
    %v33 = vsub.s32 0, %v32
    %v34 = vrot.slane %v29, %v33
    %v36 = vadd.f32 %v28, %v34
    %vm37 = vcmask 523264
    %38 = vst.msk [vmem:[#allocation6] sm:$0xff] %vm37, %v36
    // Predicated region
    $region18: #{tpu_custom_call.1} parent=1 // pred_check
      _
    $region19: #{tpu_custom_call.1} parent=1 // pred_check_branch
      %40 = sbr.rel (0) target = $region21
    $region20: #{tpu_custom_call.1} parent=1 // pred_region
      %s42 = ssub.s32 128, 128
      %43 = vsyncadd [#allocation5], %s42
      %s45 = sshll.u32 [#allocation6], 4
      %s46 = int_to_ptr.vmem [resolvable:$true] %s45
      %48 = dma.vmem_to_hbm [thread:$0]  %s46, 128, %s3, [#allocation5]
    $region21: #{tpu_custom_call.1} parent=1 // pred_fallthru
      _
    // Predicated region
    $region22: #{tpu_custom_call.1} parent=1 // pred_check
      _
    $region23: #{tpu_custom_call.1} parent=1 // pred_check_branch
      %50 = sbr.rel (0) target = $region25
    $region24: #{tpu_custom_call.1} parent=1 // pred_region
      %51 = dma.done [#allocation5], 128
    $region25: #{tpu_custom_call.1} parent=1 // pred_fallthru
      _
    %52 = vsyncpa [#allocation4], 1
    %53 = vsyncpa [#allocation5], 1

</llo_original>
